<compile_context>
chip_gen: v7x
topology: tpu7x:2x2x1
jax: 0.10.0
libtpu: 0.0.40
codegen_flags: <defaults>
</compile_context>

<pallas_src>
import functools

import jax
import jax.numpy as jnp
from jax import lax
from jax.experimental import pallas as pl
from jax.experimental.pallas import tpu as pltpu


def _round_up(x, m):
    return ((x + m - 1) // m) * m


# ----------------------------------------------------------------------------- kernel
def _unit3d_kernel(*refs, shifts, apply_relu, halo):
    """Shift-accumulate conv3d tile with fused scale/shift (+ReLU) epilogue.

    halo=True : refs = (xa, xb, w, scale, shift, out).  xa/xb are two consecutive
                (tm, C_in) bf16 row-blocks of the flattened padded NDHWC input; the
                stitched 2*tm window covers the receptive field of this tile.
    halo=False: refs = (xa, w, scale, shift, out); pointwise matmul, shifts == (0,).
    w is (n_taps, C_in, C_out_pad) bf16; scale/shift are (1, C_out_pad) f32.
    """
    if halo:
        xa_ref, xb_ref, w_ref, sc_ref, sh_ref, o_ref = refs
        tm = xa_ref.shape[0]
        # Stitch the halo window in f32 (robust layout for unaligned sublane slices).
        window = jnp.concatenate(
            [xa_ref[...].astype(jnp.float32), xb_ref[...].astype(jnp.float32)],
            axis=0)                                           # (2*tm, C_in)
    else:
        xa_ref, w_ref, sc_ref, sh_ref, o_ref = refs
        tm = xa_ref.shape[0]
        window = None

    acc = None
    for j, s in enumerate(shifts):                            # static unrolled tap loop
        if halo:
            a = window[s:s + tm, :].astype(jnp.bfloat16)      # static slice -> bf16 MXU
        else:
            a = xa_ref[...]                                   # already bf16
        part = jnp.dot(a, w_ref[j], preferred_element_type=jnp.float32)
        acc = part if acc is None else acc + part

    y = acc * sc_ref[...] + sh_ref[...]                       # fused bias / eval-BN
    if apply_relu:
        y = jnp.maximum(y, 0.0)
    o_ref[...] = y.astype(o_ref.dtype)


def _fused_conv(x_flat, w_stack, scale, shift, shifts, *, apply_relu, base_tm=512):
    """x_flat: (M, C_in) float; w_stack: (n_taps, C_in, C_out_pad) bf16;
    scale/shift: (C_out_pad,) f32.  Returns (Mp, C_out_pad) f32."""
    M, c_in = x_flat.shape
    n_taps, c_in_w, cpad = w_stack.shape
    assert c_in_w == c_in and n_taps == len(shifts)

    max_shift = int(max(shifts))
    halo = (n_taps > 1) or (max_shift > 0)

    tm = base_tm
    if halo:
        # Stitched 2*tm window must cover the largest tap shift.
        # TODO(synk): very large Hp*Wp*C_in halos (big spatial dims + wide channels)
        # would need H/W-tiled halo blocks to bound VMEM; fine for Unit3D-scale shapes.
        tm = max(tm, _round_up(max_shift, 128))
    mp = _round_up(M, tm)
    extra_rows = (mp - M) + (tm if halo else 0)   # +tm: halo block of the last tile

    x_flat = x_flat.astype(jnp.bfloat16)
    if extra_rows:
        x_flat = jnp.pad(x_flat, ((0, extra_rows), (0, 0)))

    scale2 = scale.reshape(1, cpad).astype(jnp.float32)
    shift2 = shift.reshape(1, cpad).astype(jnp.float32)

    in_specs = [pl.BlockSpec((tm, c_in), lambda i: (i, 0))]
    inputs = [x_flat]
    if halo:
        in_specs.append(pl.BlockSpec((tm, c_in), lambda i: (i + 1, 0)))  # halo block
        inputs.append(x_flat)
    in_specs += [
        pl.BlockSpec((n_taps, c_in, cpad), lambda i: (0, 0, 0)),   # resident weights
        pl.BlockSpec((1, cpad), lambda i: (0, 0)),                 # fused scale
        pl.BlockSpec((1, cpad), lambda i: (0, 0)),                 # fused shift
    ]
    inputs += [w_stack, scale2, shift2]

    kernel = functools.partial(
        _unit3d_kernel,
        shifts=tuple(int(s) for s in shifts),
        apply_relu=apply_relu,
        halo=halo)

    return pl.pallas_call(
        kernel,
        out_shape=jax.ShapeDtypeStruct((mp, cpad), jnp.float32),
        grid_spec=pltpu.PrefetchScalarGridSpec(
            num_scalar_prefetch=0,
            grid=(mp // tm,),
            in_specs=in_specs,
            out_specs=pl.BlockSpec((tm, cpad), lambda i: (i, 0)),
        ),
        compiler_params=pltpu.CompilerParams(
            dimension_semantics=("parallel",),
            vmem_limit_bytes=32 * 1024 * 1024),
    )(*inputs)


# ------------------------------------------------------------------------------ module
class Unit3D:
    """JAX/Pallas port of the PyTorch Unit3D module (forward semantics)."""

    def __init__(self, in_channels, output_channels, kernel_shape=(1, 1, 1),
                 stride=(1, 1, 1), padding='spatial_valid', activation_fn='relu',
                 use_batch_norm=False, use_bias=False, key=None):
        self._in_channels = in_channels
        self._output_channels = output_channels
        self._kernel_shape = tuple(kernel_shape)
        self._stride = tuple(stride)
        self._use_batch_norm = use_batch_norm
        self._activation_fn = activation_fn
        self._use_bias = use_bias
        self.padding = padding

        key = jax.random.PRNGKey(42) if key is None else key
        kw_, kb_, kg_, kbeta_ = jax.random.split(key, 4)
        kt, kh, kw = self._kernel_shape
        fan_in = in_channels * kt * kh * kw
        bound = 1.0 / jnp.sqrt(fan_in)
        # conv weight: (C_out, C_in, kT, kH, kW) -- PyTorch layout
        self.weight = jax.random.uniform(
            kw_, (output_channels, in_channels, kt, kh, kw),
            minval=-bound, maxval=bound, dtype=jnp.float32)
        self.bias = (jax.random.uniform(kb_, (output_channels,), minval=-bound,
                                        maxval=bound, dtype=jnp.float32)
                     if use_bias else jnp.zeros((output_channels,), jnp.float32))
        # BatchNorm3d params (eval mode: running stats).
        # TODO(synk): training-mode BN (batch statistics) not implemented; eval-mode fold only.
        self.bn_gamma = 1.0 + 0.1 * jax.random.normal(kg_, (output_channels,), jnp.float32)
        self.bn_beta = 0.1 * jax.random.normal(kbeta_, (output_channels,), jnp.float32)
        self.bn_mean = jnp.zeros((output_channels,), jnp.float32)
        self.bn_var = jnp.ones((output_channels,), jnp.float32)
        self.bn_eps = 1e-3

    def _compute_pad(self, dim, s):
        k = self._kernel_shape[dim]
        st = self._stride[dim]
        if s % st == 0:
            return max(k - st, 0)
        return max(k - s % st, 0)

    def _pad_input(self, x):
        _, _, t, h, w = x.shape
        if self.padding == 'same':
            pad_t = self._compute_pad(0, t)
            pad_h = self._compute_pad(1, h)
            pad_w = self._compute_pad(2, w)
            ptf, ptb = pad_t // 2, pad_t - pad_t // 2
            phf, phb = pad_h // 2, pad_h - pad_h // 2
            pwf, pwb = pad_w // 2, pad_w - pad_w // 2
            x = jnp.pad(x, ((0, 0), (0, 0), (ptf, ptb), (phf, phb), (pwf, pwb)))
        elif self.padding == 'spatial_valid':
            pad_t = self._compute_pad(0, t)
            ptf, ptb = pad_t // 2, pad_t - pad_t // 2
            x = jnp.pad(x, ((0, 0), (0, 0), (ptf, ptb), (0, 0), (0, 0)))
        return x

    def __call__(self, x):
        x = x.astype(jnp.float32)
        x = self._pad_input(x)
        N, C, Tp, Hp, Wp = x.shape
        kt, kh, kw = self._kernel_shape
        s_t, s_h, s_w = self._stride
        C_out = self._output_channels
        cpad = _round_up(C_out, 128)              # lane-dense output columns

        # Fold conv bias + eval-mode BN into a single scale/shift epilogue (padded).
        if self._use_batch_norm:
            inv_std = 1.0 / jnp.sqrt(self.bn_var + self.bn_eps)
            scale = self.bn_gamma * inv_std
            shift = self.bn_beta + scale * (self.bias - self.bn_mean)
        else:
            scale = jnp.ones((C_out,), jnp.float32)
            shift = self.bias
        scale = jnp.pad(scale, (0, cpad - C_out), constant_values=1.0)
        shift = jnp.pad(shift, (0, cpad - C_out))

        # Weight -> (n_taps, C_in, C_out_pad) bf16, tap-major to match the shift list.
        w_stack = self.weight.transpose(2, 3, 4, 1, 0).reshape(kt * kh * kw, C, C_out)
        w_stack = jnp.pad(w_stack, ((0, 0), (0, 0), (0, cpad - C_out))).astype(jnp.bfloat16)

        relu = (self._activation_fn == 'relu')

        if (kt, kh, kw) == (1, 1, 1):
            # Pointwise fast path: no im2col, no halo; stride == input subsampling.
            if (s_t, s_h, s_w) != (1, 1, 1):
                x = x[:, :, ::s_t, ::s_h, ::s_w]
            N, C, To, Ho, Wo = x.shape
            x_flat = x.transpose(0, 2, 3, 4, 1).reshape(-1, C)
            out = _fused_conv(x_flat, w_stack, scale, shift, (0,), apply_relu=relu)
            out = out[:N * To * Ho * Wo, :C_out].reshape(N, To, Ho, Wo, C_out)
        else:
            # General conv: stride-1 shift-accumulate over the padded NDHWC grid
            # (no materialized im2col), then crop (and subsample if strided).
            x_flat = x.transpose(0, 2, 3, 4, 1).reshape(-1, C)
            shifts = tuple((dt * Hp + dh) * Wp + dw
                           for dt in range(kt) for dh in range(kh) for dw in range(kw))
            out = _fused_conv(x_flat, w_stack, scale, shift, shifts, apply_relu=relu)
            To1, Ho1, Wo1 = Tp - kt + 1, Hp - kh + 1, Wp - kw + 1
            out = out[:N * Tp * Hp * Wp, :C_out].reshape(N, Tp, Hp, Wp, C_out)
            out = out[:, :To1, :Ho1, :Wo1, :]
            if (s_t, s_h, s_w) != (1, 1, 1):
                # TODO(synk): strided k>1 convs recompute the stride-1 grid and subsample;
                # a dedicated strided tiling would avoid the extra work.
                out = out[:, ::s_t, ::s_h, ::s_w, :]
        # NDHWC -> NCDHW to match the PyTorch module's output layout.
        return out.transpose(0, 4, 1, 2, 3)


# ---------------------------------------------------------------------------- reference
def _reference(module, x):
    x = module._pad_input(x.astype(jnp.float32))
    # Match the kernel's bf16 input/weight quantization so only f32 accumulation
    # order differs between the two paths.
    xq = x.astype(jnp.bfloat16).astype(jnp.float32)
    wq = module.weight.astype(jnp.bfloat16).astype(jnp.float32)
    y = lax.conv_general_dilated(
        xq, wq, window_strides=module._stride, padding='VALID',
        dimension_numbers=('NCDHW', 'OIDHW', 'NCDHW'),
        precision=lax.Precision.HIGHEST)
    y = y + module.bias.reshape(1, -1, 1, 1, 1)
    if module._use_batch_norm:
        inv_std = 1.0 / jnp.sqrt(module.bn_var + module.bn_eps)
        y = ((y - module.bn_mean.reshape(1, -1, 1, 1, 1))
             * (module.bn_gamma * inv_std).reshape(1, -1, 1, 1, 1)
             + module.bn_beta.reshape(1, -1, 1, 1, 1))
    if module._activation_fn == 'relu':
        y = jnp.maximum(y, 0.0)
    return y


if __name__ == "__main__":
    key = jax.random.PRNGKey(0)
    x = jax.random.normal(key, (2, 4, 8, 16, 16), dtype=jnp.float32)  # N,C,T,H,W

    # Case 1: module defaults — 1x1x1 pointwise conv, spatial_valid, ReLU, no bias/BN.
    m1 = Unit3D(in_channels=4, output_channels=8, key=jax.random.PRNGKey(1))
    y1 = jax.block_until_ready(m1(x))
    r1 = _reference(m1, x)
    assert y1.shape == (2, 8, 8, 16, 16)
    assert jnp.allclose(y1, r1, atol=2e-3, rtol=2e-3)

    # Case 2: 3x3x3 'same' conv with bias + (eval-mode) batch norm + ReLU.
    m2 = Unit3D(in_channels=4, output_channels=8, kernel_shape=(3, 3, 3),
                stride=(1, 1, 1), padding='same', use_batch_norm=True,
                use_bias=True, key=jax.random.PRNGKey(2))
    y2 = jax.block_until_ready(m2(x))
    r2 = _reference(m2, x)
    assert y2.shape == (2, 8, 8, 16, 16)
    assert jnp.allclose(y2, r2, atol=2e-3, rtol=2e-3)

    print("KERNEL_OK")
</pallas_src>

<mosaic_0001>
module attributes {stable_mosaic.version = 11 : i64} {
  func.func @_unit3d_kernel(%arg0: i32, %arg1: memref<512x4xbf16, #tpu.memory_space<vmem>>, %arg2: memref<1x4x128xbf16, #tpu.memory_space<vmem>>, %arg3: memref<1x128xf32, #tpu.memory_space<vmem>>, %arg4: memref<1x128xf32, #tpu.memory_space<vmem>>, %arg5: memref<512x128xf32, #tpu.memory_space<vmem>>) attributes {dimension_semantics = [#tpu.dimension_semantics<parallel>], iteration_bounds = array<i64: 8>, scalar_prefetch = 0 : i64, scratch_operands = 0 : i64, tpu.core_type = #tpu.core_type<tc>, window_params = [{transform_indices = @transform_0, window_bounds = array<i64: 512, 4>}, {pipeline_mode = #tpu.pipeline_mode<synchronous>, transform_indices = @transform_1, window_bounds = array<i64: 1, 4, 128>}, {pipeline_mode = #tpu.pipeline_mode<synchronous>, transform_indices = @transform_2, window_bounds = array<i64: 1, 128>}, {pipeline_mode = #tpu.pipeline_mode<synchronous>, transform_indices = @transform_3, window_bounds = array<i64: 1, 128>}, {transform_indices = @transform_4, window_bounds = array<i64: 512, 128>}]} {
    %c0 = arith.constant 0 : index
    %c0_0 = arith.constant 0 : index
    %0 = vector.load %arg1[%c0, %c0_0] : memref<512x4xbf16, #tpu.memory_space<vmem>>, vector<512x4xbf16>
    %c0_1 = arith.constant 0 : index
    %c0_2 = arith.constant 0 : index
    %c0_3 = arith.constant 0 : index
    %1 = vector.load %arg2[%c0_1, %c0_2, %c0_3] : memref<1x4x128xbf16, #tpu.memory_space<vmem>>, vector<1x4x128xbf16>
    %2 = vector.shape_cast %1 : vector<1x4x128xbf16> to vector<4x128xbf16>
    %cst = arith.constant dense<0.000000e+00> : vector<512x128xf32>
    %3 = tpu.matmul %0, %2, %cst {dimension_numbers = #tpu.dot_dimension_numbers<[1], [0], [0], [1], [0, 0, 1, 1], [], []>} : vector<512x4xbf16>, vector<4x128xbf16>, vector<512x128xf32> -> vector<512x128xf32>
    %c0_4 = arith.constant 0 : index
    %c0_5 = arith.constant 0 : index
    %4 = vector.load %arg3[%c0_4, %c0_5] : memref<1x128xf32, #tpu.memory_space<vmem>>, vector<1x128xf32>
    %5 = vector.broadcast %4 : vector<1x128xf32> to vector<512x128xf32>
    %6 = arith.mulf %3, %5 : vector<512x128xf32>
    %c0_6 = arith.constant 0 : index
    %c0_7 = arith.constant 0 : index
    %7 = vector.load %arg4[%c0_6, %c0_7] : memref<1x128xf32, #tpu.memory_space<vmem>>, vector<1x128xf32>
    %8 = vector.broadcast %7 : vector<1x128xf32> to vector<512x128xf32>
    %9 = arith.addf %6, %8 : vector<512x128xf32>
    %cst_8 = arith.constant 0.000000e+00 : f32
    %10 = vector.broadcast %cst_8 : f32 to vector<512x128xf32>
    %11 = arith.maximumf %9, %10 : vector<512x128xf32>
    %c0_9 = arith.constant 0 : index
    %c0_10 = arith.constant 0 : index
    %12 = vector.load %arg5[%c0_9, %c0_10] : memref<512x128xf32, #tpu.memory_space<vmem>>, vector<512x128xf32>
    tpu.vector_store %arg5[%c0_9, %c0_10], %11 {strides = array<i32>} : memref<512x128xf32, #tpu.memory_space<vmem>>, vector<512x128xf32>,
    return
  }
  func.func @transform_0(%arg0: i32) -> (i32, i32) {
    %c0_i32 = arith.constant 0 : i32
    %c0_i32_0 = arith.constant 0 : i32
    return %arg0, %c0_i32 : i32, i32
  }
  func.func @transform_1(%arg0: i32) -> (i32, i32, i32) {
    %c0_i32 = arith.constant 0 : i32
    %c0_i32_0 = arith.constant 0 : i32
    %c0_i32_1 = arith.constant 0 : i32
    %c0_i32_2 = arith.constant 0 : i32
    return %c0_i32, %c0_i32_0, %c0_i32_1 : i32, i32, i32
  }
  func.func @transform_2(%arg0: i32) -> (i32, i32) {
    %c0_i32 = arith.constant 0 : i32
    %c0_i32_0 = arith.constant 0 : i32
    %c0_i32_1 = arith.constant 0 : i32
    return %c0_i32, %c0_i32_0 : i32, i32
  }
  func.func @transform_3(%arg0: i32) -> (i32, i32) {
    %c0_i32 = arith.constant 0 : i32
    %c0_i32_0 = arith.constant 0 : i32
    %c0_i32_1 = arith.constant 0 : i32
    return %c0_i32, %c0_i32_0 : i32, i32
  }
  func.func @transform_4(%arg0: i32) -> (i32, i32) {
    %c0_i32 = arith.constant 0 : i32
    %c0_i32_0 = arith.constant 0 : i32
    return %arg0, %c0_i32 : i32, i32
  }
}

</mosaic_0001>

<llo_original>
// kernel: tpu_custom_call.1
$region0: #{tpu_custom_call.1}
  #allocation0 [shape = 'u32[]', space=smem, size = 0x4, offset = 0x4, fixed_abs, tag = 'smem constant byte address 0x4 - core index']
  #allocation1 [shape = 'u32[144,128]{1,0:T(1,128)}', space=vmem, size = 0x12000, scoped, tag = 'internal scratch']
  %s0 = inlined_call_operand.vmem [shape: bf16[4096,4], index: 0, kind: input, shape index: {}]
  %s1 = inlined_call_operand.hbm [shape: bf16[1,4,128], index: 1, kind: input, shape index: {}]
  %s2 = inlined_call_operand.hbm [shape: f32[1,128], index: 2, kind: input, shape index: {}]
  %s3 = inlined_call_operand.hbm [shape: f32[1,128], index: 3, kind: input, shape index: {}]
  %s4 = inlined_call_operand.hbm [shape: f32[4096,128], index: 4, kind: output, shape index: {}]
  %s5 = sld [smem:[#allocation0]]
  $region61: #{tpu_custom_call.1} parent=0
    _
  %s7 = ssub.s32 1, %s5
  %s8 = scalar_select 0, %s7, %s5
  $region1: #{tpu_custom_call.1} parent=0
    #allocation2 [shape = 'u8[1024]{0}', space=vmem, size = 0x400, scoped, tag = 'input window, operand 1, single buffered']
    #allocation3 [shape = 's32[2]{0}', space=sflag, size = 0x8, scoped, tag = 'scoped memory for tpu_custom_call.1']
    #allocation4 [shape = 's32[2]{0}', space=sflag, size = 0x8, scoped, tag = 'scoped memory for tpu_custom_call.1']
    #allocation5 [shape = 'u8[512]{0}', space=vmem, size = 0x400, scoped, tag = 'input window, operand 2, single buffered']
    #allocation6 [shape = 's32[1]{0}', space=sflag, size = 0x4, scoped, tag = 'scoped memory for tpu_custom_call.1']
    #allocation7 [shape = 'u8[512]{0}', space=vmem, size = 0x400, scoped, tag = 'input window, operand 3, single buffered']
    #allocation8 [shape = 'u8[524288]{0}', space=vmem, size = 0x80000, scoped, tag = 'output window, operand 0']
    %9 = vsyncpa [#allocation3], 0
    %10 = vsyncpa [#allocation6], 0
    %11 = vsyncpa [#allocation4], 0
    %s12 = scalar_lea.sflag [#allocation4], 1
    %13 = vsyncpa %s12, 0
    loop: start=0, step=1, limit=10
    $region2: #{tpu_custom_call.1} parent=1 // loop_pre_header
      _
    $region3: #{tpu_custom_call.1} parent=1 // loop_header
      %s15 = sphi 0, %s19
      %p16 = scmp.ge.s32.totalorder %s15, 10
      %s25 = sphi 0, %s27
      %s28 = sphi 0, %s25
      %s29 = sphi 0, %s28
      %s45 = sphi 0, %s29
      %s49 = sphi 0, %s49
      %s51 = sphi 0, %s49
      %s52 = sphi 0, %s51
      %s66 = sphi 0, %s52
      %s70 = sphi 0, %s70
      %s72 = sphi 0, %s70
      %s73 = sphi 0, %s72
      %s87 = sphi 0, %s73
      %s91 = sphi 0, %s91
      %s93 = sphi 0, %s91
      %s94 = sphi 0, %s93
      %s108 = sphi 0, %s94
      %s114 = sphi 0, %s116
      %s117 = sphi 0, %s114
      %s118 = sphi 0, %s117
      %s134 = sphi 0, %s118
    $region4: #{tpu_custom_call.1} parent=1 // loop_header_branch
      %18 = sbr.rel (%p16) target = $region8
    $region5: #{tpu_custom_call.1} parent=1 // loop_body
      %s20 = ssub.s32 %s15, 1
      %s21 = ssub.s32 %s15, 2
      %s22 = sadd.s32 %s15, 1
      %s23 = ssub.s32 %s15, %s22
      %p24 = scmp.eq.s32.totalorder %s23, 0
      %s26 = sadd.s32 %s25, 1
      %s27 = scalar_select %p24, %s25, %s26
      %p30 = pneg %p24
      %p31 = scmp.eq.s32.totalorder %s15, 7
      %p32 = por %p30, %p31
      %p33 = scmp.ne.s32.totalorder %s25, %s28
      %p34 = scmp.eq.s32.totalorder %s15, 0
      %p35 = por %p33, %p34
      %p36 = scmp.ne.s32.totalorder %s25, %s28
      %p37 = scmp.eq.s32.totalorder %s20, 7
      %p38 = por %p36, %p37
      %p39 = scmp.ne.s32.totalorder %s28, %s29
      %p40 = scmp.eq.s32.totalorder %s20, 0
      %p41 = por %p39, %p40
      %p42 = scmp.ne.s32.totalorder %s28, %s29
      %p43 = scmp.eq.s32.totalorder %s21, 7
      %p44 = por %p42, %p43
      %p46 = scmp.ne.s32.totalorder %s29, %s45
      %p47 = scmp.eq.s32.totalorder %s21, 0
      %p48 = por %p46, %p47
      %s50 = sadd.s32 %s49, 1
      %p53 = scmp.eq.s32.totalorder %s15, 7
      %p54 = scmp.ne.s32.totalorder %s49, %s51
      %p55 = scmp.eq.s32.totalorder %s15, 0
      %p56 = por %p54, %p55
      %p57 = scmp.ne.s32.totalorder %s49, %s51
      %p58 = scmp.eq.s32.totalorder %s20, 7
      %p59 = por %p57, %p58
      %p60 = scmp.ne.s32.totalorder %s51, %s52
      %p61 = scmp.eq.s32.totalorder %s20, 0
      %p62 = por %p60, %p61
      %p63 = scmp.ne.s32.totalorder %s51, %s52
      %p64 = scmp.eq.s32.totalorder %s21, 7
      %p65 = por %p63, %p64
      %p67 = scmp.ne.s32.totalorder %s52, %s66
      %p68 = scmp.eq.s32.totalorder %s21, 0
      %p69 = por %p67, %p68
      %s71 = sadd.s32 %s70, 1
      %p74 = scmp.eq.s32.totalorder %s15, 7
      %p75 = scmp.ne.s32.totalorder %s70, %s72
      %p76 = scmp.eq.s32.totalorder %s15, 0
      %p77 = por %p75, %p76
      %p78 = scmp.ne.s32.totalorder %s70, %s72
      %p79 = scmp.eq.s32.totalorder %s20, 7
      %p80 = por %p78, %p79
      %p81 = scmp.ne.s32.totalorder %s72, %s73
      %p82 = scmp.eq.s32.totalorder %s20, 0
      %p83 = por %p81, %p82
      %p84 = scmp.ne.s32.totalorder %s72, %s73
      %p85 = scmp.eq.s32.totalorder %s21, 7
      %p86 = por %p84, %p85
      %p88 = scmp.ne.s32.totalorder %s73, %s87
      %p89 = scmp.eq.s32.totalorder %s21, 0
      %p90 = por %p88, %p89
      %s92 = sadd.s32 %s91, 1
      %p95 = scmp.eq.s32.totalorder %s15, 7
      %p96 = scmp.ne.s32.totalorder %s91, %s93
      %p97 = scmp.eq.s32.totalorder %s15, 0
      %p98 = por %p96, %p97
      %p99 = scmp.ne.s32.totalorder %s91, %s93
      %p100 = scmp.eq.s32.totalorder %s20, 7
      %p101 = por %p99, %p100
      %p102 = scmp.ne.s32.totalorder %s93, %s94
      %p103 = scmp.eq.s32.totalorder %s20, 0
      %p104 = por %p102, %p103
      %p105 = scmp.ne.s32.totalorder %s93, %s94
      %p106 = scmp.eq.s32.totalorder %s21, 7
      %p107 = por %p105, %p106
      %p109 = scmp.ne.s32.totalorder %s94, %s108
      %p110 = scmp.eq.s32.totalorder %s21, 0
      %p111 = por %p109, %p110
      %s112 = ssub.s32 %s15, %s22
      %p113 = scmp.eq.s32.totalorder %s112, 0
      %s115 = sadd.s32 %s114, 1
      %s116 = scalar_select %p113, %s114, %s115
      %p119 = pneg %p113
      %p120 = scmp.eq.s32.totalorder %s15, 7
      %p121 = por %p119, %p120
      %p122 = scmp.ne.s32.totalorder %s114, %s117
      %p123 = scmp.eq.s32.totalorder %s15, 0
      %p124 = por %p122, %p123
      %p125 = scmp.ne.s32.totalorder %s114, %s117
      %p126 = scmp.eq.s32.totalorder %s20, 7
      %p127 = por %p125, %p126
      %p128 = scmp.ne.s32.totalorder %s117, %s118
      %p129 = scmp.eq.s32.totalorder %s20, 0
      %p130 = por %p128, %p129
      %p131 = scmp.ne.s32.totalorder %s117, %s118
      %p132 = scmp.eq.s32.totalorder %s21, 7
      %p133 = por %p131, %p132
      %p135 = scmp.ne.s32.totalorder %s118, %s134
      %p136 = scmp.eq.s32.totalorder %s21, 0
      %p137 = por %p135, %p136
      %p138 = scmp.le.s32.totalorder 1, %s15
      %p139 = scmp.lt.s32.totalorder %s15, 9
      %p140 = pnand %p138, %p139
      %p141 = pneg %p140
      // Predicated region
      $region9: #{tpu_custom_call.1} parent=5 // pred_check
        _
      $region10: #{tpu_custom_call.1} parent=5 // pred_check_branch
        %143 = sbr.rel (%p140) target = $region12
      $region11: #{tpu_custom_call.1} parent=5 // pred_region
        %s144 = ssub.s32 %s15, 1
        // Predicated region
        $region13: #{tpu_custom_call.1} parent=11 // pred_check
          %p145 = pneg %p62
        $region14: #{tpu_custom_call.1} parent=11 // pred_check_branch
          %147 = sbr.rel (%p145) target = $region16
        $region15: #{tpu_custom_call.1} parent=11 // pred_region
          %s149 = ssub.s32 32, 32
          %150 = vsyncadd [#allocation3], %s149
          %s152 = sshll.u32 [#allocation2], 4
          %s153 = int_to_ptr.vmem [resolvable:$true] %s152
          %155 = dma.hbm_to_vmem [thread:$0]  %s1, 32, %s153, [#allocation3]
        $region16: #{tpu_custom_call.1} parent=11 // pred_fallthru
          _
        // Predicated region
        $region17: #{tpu_custom_call.1} parent=11 // pred_check
          %p156 = pneg %p83
        $region18: #{tpu_custom_call.1} parent=11 // pred_check_branch
          %158 = sbr.rel (%p156) target = $region20
        $region19: #{tpu_custom_call.1} parent=11 // pred_region
          %s160 = ssub.s32 16, 16
          %161 = vsyncadd [#allocation6], %s160
          %s163 = sshll.u32 [#allocation5], 4
          %s164 = int_to_ptr.vmem [resolvable:$true] %s163
          %166 = dma.hbm_to_vmem [thread:$0]  %s2, 16, %s164, [#allocation6]
        $region20: #{tpu_custom_call.1} parent=11 // pred_fallthru
          _
        // Predicated region
        $region21: #{tpu_custom_call.1} parent=11 // pred_check
          %p167 = pneg %p104
        $region22: #{tpu_custom_call.1} parent=11 // pred_check_branch
          %169 = sbr.rel (%p167) target = $region24
        $region23: #{tpu_custom_call.1} parent=11 // pred_region
          %s171 = ssub.s32 16, 16
          %172 = vsyncadd [#allocation6], %s171
          %s174 = sshll.u32 [#allocation7], 4
          %s175 = int_to_ptr.vmem [resolvable:$true] %s174
          %177 = dma.hbm_to_vmem [thread:$0]  %s3, 16, %s175, [#allocation6]
        $region24: #{tpu_custom_call.1} parent=11 // pred_fallthru
          _
      $region12: #{tpu_custom_call.1} parent=5 // pred_fallthru
        _
      %p178 = scmp.lt.s32.totalorder %s15, 8
      // Predicated region
      $region25: #{tpu_custom_call.1} parent=5 // pred_check
        %p179 = pneg %p178
      $region26: #{tpu_custom_call.1} parent=5 // pred_check_branch
        %181 = sbr.rel (%p179) target = $region28
      $region27: #{tpu_custom_call.1} parent=5 // pred_region
        // Predicated region
        $region29: #{tpu_custom_call.1} parent=27 // pred_check
          %p182 = pneg %p35
        $region30: #{tpu_custom_call.1} parent=27 // pred_check_branch
          %184 = sbr.rel (%p182) target = $region32
        $region31: #{tpu_custom_call.1} parent=27 // pred_region
          %s185 = smul.u32 64, %s15
          %p186 = scmp.lt.s32.totalorder %s185, 511
          %s187 = scalar_select %p186, %s185, 511
          %s188 = smul.addr %s187, 4
          %s189 = scalar_lea.vmem %s0, %s188
          %s190 = smul.u32 64, %s15
        $region32: #{tpu_custom_call.1} parent=27 // pred_fallthru
          _
      $region28: #{tpu_custom_call.1} parent=5 // pred_fallthru
        _
      %p191 = scmp.le.s32.totalorder 1, %s15
      %p192 = scmp.lt.s32.totalorder %s15, 9
      %p193 = pnand %p191, %p192
      %p194 = pneg %p193
      // Predicated region
      $region33: #{tpu_custom_call.1} parent=5 // pred_check
        _
      $region34: #{tpu_custom_call.1} parent=5 // pred_check_branch
        %196 = sbr.rel (%p193) target = $region36
      $region35: #{tpu_custom_call.1} parent=5 // pred_region
        %s197 = ssub.s32 %s15, 1
        // Predicated region
        $region37: #{tpu_custom_call.1} parent=35 // pred_check
          %p198 = pneg %p62
        $region38: #{tpu_custom_call.1} parent=35 // pred_check_branch
          %200 = sbr.rel (%p198) target = $region40
        $region39: #{tpu_custom_call.1} parent=35 // pred_region
          %201 = dma.done [#allocation3], 32
        $region40: #{tpu_custom_call.1} parent=35 // pred_fallthru
          _
        // Predicated region
        $region41: #{tpu_custom_call.1} parent=35 // pred_check
          %p202 = pneg %p83
        $region42: #{tpu_custom_call.1} parent=35 // pred_check_branch
          %204 = sbr.rel (%p202) target = $region44
        $region43: #{tpu_custom_call.1} parent=35 // pred_region
          %205 = dma.done [#allocation6], 16
        $region44: #{tpu_custom_call.1} parent=35 // pred_fallthru
          _
        // Predicated region
        $region45: #{tpu_custom_call.1} parent=35 // pred_check
          %p206 = pneg %p104
        $region46: #{tpu_custom_call.1} parent=35 // pred_check_branch
          %208 = sbr.rel (%p206) target = $region48
        $region47: #{tpu_custom_call.1} parent=35 // pred_region
          %209 = dma.done [#allocation6], 16
        $region48: #{tpu_custom_call.1} parent=35 // pred_fallthru
          _
        %s210 = smul.u32 64, %s20
        %p211 = scmp.lt.s32.totalorder %s210, 511
        %s212 = scalar_select %p211, %s210, 511
        %s213 = smul.addr %s212, 4
        %s214 = scalar_lea.vmem %s0, %s213
        %p215 = pneg %p41
        %p216 = pneg %p38
        %p217 = pneg %p62
        %p218 = pneg %p59
        %p219 = pneg %p83
        %p220 = pneg %p80
        %p221 = pneg %p104
        %p222 = pneg %p101
        %p223 = pneg %p130
        %p224 = pneg %p127
        %s225 = sand.u32 %s117, 1
        %s226 = scalar_lea.sflag [#allocation4], %s225
        %s227 = sand.u32 %s117, 1
        %s228 = smul.addr %s227, 512
        %s229 = scalar_lea.vmem [#allocation8], %s228
        %s230 = smul.u32 64, %s20
        %p231 = scmp.lt.s32.totalorder %s230, 511
        %s232 = scalar_select %p231, %s230, 511
        %s233 = smul.addr %s232, 4
        %s234 = scalar_lea.vmem %s0, %s233
        %s235 = smul.u32 64, %s20
        %s236 = smul.u32 64, %s20
        %v238 = vld [vmem:[%s234] sm:$0xf]
        %v239 = vld [vmem:[%s234 + $0x4] sm:$0xf]
        %v240 = vld [vmem:[%s234 + $0x8] sm:$0xf]
        %v241 = vld [vmem:[%s234 + $0xc] sm:$0xf]
        %v242 = vld [vmem:[%s234 + $0x10] sm:$0xf]
        %v243 = vld [vmem:[%s234 + $0x14] sm:$0xf]
        %v244 = vld [vmem:[%s234 + $0x18] sm:$0xf]
        %v245 = vld [vmem:[%s234 + $0x1c] sm:$0xf]
        %v246 = vld [vmem:[%s234 + $0x20] sm:$0xf]
        %v247 = vld [vmem:[%s234 + $0x24] sm:$0xf]
        %v248 = vld [vmem:[%s234 + $0x28] sm:$0xf]
        %v249 = vld [vmem:[%s234 + $0x2c] sm:$0xf]
        %v250 = vld [vmem:[%s234 + $0x30] sm:$0xf]
        %v251 = vld [vmem:[%s234 + $0x34] sm:$0xf]
        %v252 = vld [vmem:[%s234 + $0x38] sm:$0xf]
        %v253 = vld [vmem:[%s234 + $0x3c] sm:$0xf]
        %v254 = vld [vmem:[%s234 + $0x40] sm:$0xf]
        %v255 = vld [vmem:[%s234 + $0x44] sm:$0xf]
        %v256 = vld [vmem:[%s234 + $0x48] sm:$0xf]
        %v257 = vld [vmem:[%s234 + $0x4c] sm:$0xf]
        %v258 = vld [vmem:[%s234 + $0x50] sm:$0xf]
        %v259 = vld [vmem:[%s234 + $0x54] sm:$0xf]
        %v260 = vld [vmem:[%s234 + $0x58] sm:$0xf]
        %v261 = vld [vmem:[%s234 + $0x5c] sm:$0xf]
        %v262 = vld [vmem:[%s234 + $0x60] sm:$0xf]
        %v263 = vld [vmem:[%s234 + $0x64] sm:$0xf]
        %v264 = vld [vmem:[%s234 + $0x68] sm:$0xf]
        %v265 = vld [vmem:[%s234 + $0x6c] sm:$0xf]
        %v266 = vld [vmem:[%s234 + $0x70] sm:$0xf]
        %v267 = vld [vmem:[%s234 + $0x74] sm:$0xf]
        %v268 = vld [vmem:[%s234 + $0x78] sm:$0xf]
        %v269 = vld [vmem:[%s234 + $0x7c] sm:$0xf]
        %v270 = vld [vmem:[%s234 + $0x80] sm:$0xf]
        %v271 = vld [vmem:[%s234 + $0x84] sm:$0xf]
        %v272 = vld [vmem:[%s234 + $0x88] sm:$0xf]
        %v273 = vld [vmem:[%s234 + $0x8c] sm:$0xf]
        %v274 = vld [vmem:[%s234 + $0x90] sm:$0xf]
        %v275 = vld [vmem:[%s234 + $0x94] sm:$0xf]
        %v276 = vld [vmem:[%s234 + $0x98] sm:$0xf]
        %v277 = vld [vmem:[%s234 + $0x9c] sm:$0xf]
        %v278 = vld [vmem:[%s234 + $0xa0] sm:$0xf]
        %v279 = vld [vmem:[%s234 + $0xa4] sm:$0xf]
        %v280 = vld [vmem:[%s234 + $0xa8] sm:$0xf]
        %v281 = vld [vmem:[%s234 + $0xac] sm:$0xf]
        %v282 = vld [vmem:[%s234 + $0xb0] sm:$0xf]
        %v283 = vld [vmem:[%s234 + $0xb4] sm:$0xf]
        %v284 = vld [vmem:[%s234 + $0xb8] sm:$0xf]
        %v285 = vld [vmem:[%s234 + $0xbc] sm:$0xf]
        %v286 = vld [vmem:[%s234 + $0xc0] sm:$0xf]
        %v287 = vld [vmem:[%s234 + $0xc4] sm:$0xf]
        %v288 = vld [vmem:[%s234 + $0xc8] sm:$0xf]
        %v289 = vld [vmem:[%s234 + $0xcc] sm:$0xf]
        %v290 = vld [vmem:[%s234 + $0xd0] sm:$0xf]
        %v291 = vld [vmem:[%s234 + $0xd4] sm:$0xf]
        %v292 = vld [vmem:[%s234 + $0xd8] sm:$0xf]
        %v293 = vld [vmem:[%s234 + $0xdc] sm:$0xf]
        %v294 = vld [vmem:[%s234 + $0xe0] sm:$0xf]
        %v295 = vld [vmem:[%s234 + $0xe4] sm:$0xf]
        %v296 = vld [vmem:[%s234 + $0xe8] sm:$0xf]
        %v297 = vld [vmem:[%s234 + $0xec] sm:$0xf]
        %v298 = vld [vmem:[%s234 + $0xf0] sm:$0xf]
        %v299 = vld [vmem:[%s234 + $0xf4] sm:$0xf]
        %v300 = vld [vmem:[%s234 + $0xf8] sm:$0xf]
        %v301 = vld [vmem:[%s234 + $0xfc] sm:$0xf]
        %v302 = vld [vmem:[#allocation2] sm:$0x3]
        %v367 = vunpack.c.l.b16 %v238
        %v368 = vunpack.c.l.b16 %v239
        %v369 = vunpack.c.l.b16 %v240
        %v370 = vunpack.c.l.b16 %v241
        %v371 = vunpack.c.l.b16 %v242
        %v372 = vunpack.c.l.b16 %v243
        %v373 = vunpack.c.l.b16 %v244
        %v374 = vunpack.c.l.b16 %v245
        %v375 = vunpack.c.l.b16 %v246
        %v376 = vunpack.c.l.b16 %v247
        %v377 = vunpack.c.l.b16 %v248
        %v378 = vunpack.c.l.b16 %v249
        %v379 = vunpack.c.l.b16 %v250
        %v380 = vunpack.c.l.b16 %v251
        %v381 = vunpack.c.l.b16 %v252
        %v382 = vunpack.c.l.b16 %v253
        %v383 = vunpack.c.l.b16 %v254
        %v384 = vunpack.c.l.b16 %v255
        %v385 = vunpack.c.l.b16 %v256
        %v386 = vunpack.c.l.b16 %v257
        %v387 = vunpack.c.l.b16 %v258
        %v388 = vunpack.c.l.b16 %v259
        %v389 = vunpack.c.l.b16 %v260
        %v390 = vunpack.c.l.b16 %v261
        %v391 = vunpack.c.l.b16 %v262
        %v392 = vunpack.c.l.b16 %v263
        %v393 = vunpack.c.l.b16 %v264
        %v394 = vunpack.c.l.b16 %v265
        %v395 = vunpack.c.l.b16 %v266
        %v396 = vunpack.c.l.b16 %v267
        %v397 = vunpack.c.l.b16 %v268
        %v398 = vunpack.c.l.b16 %v269
        %v399 = vunpack.c.l.b16 %v270
        %v400 = vunpack.c.l.b16 %v271
        %v401 = vunpack.c.l.b16 %v272
        %v402 = vunpack.c.l.b16 %v273
        %v403 = vunpack.c.l.b16 %v274
        %v404 = vunpack.c.l.b16 %v275
        %v405 = vunpack.c.l.b16 %v276
        %v406 = vunpack.c.l.b16 %v277
        %v407 = vunpack.c.l.b16 %v278
        %v408 = vunpack.c.l.b16 %v279
        %v409 = vunpack.c.l.b16 %v280
        %v410 = vunpack.c.l.b16 %v281
        %v411 = vunpack.c.l.b16 %v282
        %v412 = vunpack.c.l.b16 %v283
        %v413 = vunpack.c.l.b16 %v284
        %v414 = vunpack.c.l.b16 %v285
        %v415 = vunpack.c.l.b16 %v286
        %v416 = vunpack.c.l.b16 %v287
        %v417 = vunpack.c.l.b16 %v288
        %v418 = vunpack.c.l.b16 %v289
        %v419 = vunpack.c.l.b16 %v290
        %v420 = vunpack.c.l.b16 %v291
        %v421 = vunpack.c.l.b16 %v292
        %v422 = vunpack.c.l.b16 %v293
        %v423 = vunpack.c.l.b16 %v294
        %v424 = vunpack.c.l.b16 %v295
        %v425 = vunpack.c.l.b16 %v296
        %v426 = vunpack.c.l.b16 %v297
        %v427 = vunpack.c.l.b16 %v298
        %v428 = vunpack.c.l.b16 %v299
        %v429 = vunpack.c.l.b16 %v300
        %v430 = vunpack.c.l.b16 %v301
        %v431 = vpack.c.b16 %v368, %v367
        %v432 = vpack.c.b16 %v370, %v369
        %v433 = vpack.c.b16 %v372, %v371
        %v434 = vpack.c.b16 %v374, %v373
        %v435 = vpack.c.b16 %v376, %v375
        %v436 = vpack.c.b16 %v378, %v377
        %v437 = vpack.c.b16 %v380, %v379
        %v438 = vpack.c.b16 %v382, %v381
        %v439 = vpack.c.b16 %v384, %v383
        %v440 = vpack.c.b16 %v386, %v385
        %v441 = vpack.c.b16 %v388, %v387
        %v442 = vpack.c.b16 %v390, %v389
        %v443 = vpack.c.b16 %v392, %v391
        %v444 = vpack.c.b16 %v394, %v393
        %v445 = vpack.c.b16 %v396, %v395
        %v446 = vpack.c.b16 %v398, %v397
        %v447 = vpack.c.b16 %v400, %v399
        %v448 = vpack.c.b16 %v402, %v401
        %v449 = vpack.c.b16 %v404, %v403
        %v450 = vpack.c.b16 %v406, %v405
        %v451 = vpack.c.b16 %v408, %v407
        %v452 = vpack.c.b16 %v410, %v409
        %v453 = vpack.c.b16 %v412, %v411
        %v454 = vpack.c.b16 %v414, %v413
        %v455 = vpack.c.b16 %v416, %v415
        %v456 = vpack.c.b16 %v418, %v417
        %v457 = vpack.c.b16 %v420, %v419
        %v458 = vpack.c.b16 %v422, %v421
        %v459 = vpack.c.b16 %v424, %v423
        %v460 = vpack.c.b16 %v426, %v425
        %v461 = vpack.c.b16 %v428, %v427
        %v462 = vpack.c.b16 %v430, %v429
        %vm463 = vcmask 31744
        %v465 = vsel %vm463, %v431, 0
        %v468 = vsel %vm463, %v432, 0
        %v471 = vsel %vm463, %v433, 0
        %v474 = vsel %vm463, %v434, 0
        %v477 = vsel %vm463, %v435, 0
        %v480 = vsel %vm463, %v436, 0
        %v483 = vsel %vm463, %v437, 0
        %v486 = vsel %vm463, %v438, 0
        %v489 = vsel %vm463, %v439, 0
        %v492 = vsel %vm463, %v440, 0
        %v495 = vsel %vm463, %v441, 0
        %v498 = vsel %vm463, %v442, 0
        %v501 = vsel %vm463, %v443, 0
        %v504 = vsel %vm463, %v444, 0
        %v507 = vsel %vm463, %v445, 0
        %v510 = vsel %vm463, %v446, 0
        %v513 = vsel %vm463, %v447, 0
        %v516 = vsel %vm463, %v448, 0
        %v519 = vsel %vm463, %v449, 0
        %v522 = vsel %vm463, %v450, 0
        %v525 = vsel %vm463, %v451, 0
        %v528 = vsel %vm463, %v452, 0
        %v531 = vsel %vm463, %v453, 0
        %v534 = vsel %vm463, %v454, 0
        %v537 = vsel %vm463, %v455, 0
        %v540 = vsel %vm463, %v456, 0
        %v543 = vsel %vm463, %v457, 0
        %v546 = vsel %vm463, %v458, 0
        %v549 = vsel %vm463, %v459, 0
        %v552 = vsel %vm463, %v460, 0
        %v555 = vsel %vm463, %v461, 0
        %v558 = vsel %vm463, %v462, 0
        %vm560 = vcmask 1041408
        %v562 = vsel %vm560, %v302, 0
        %564 = vmatprep.subr.bf16.mxu0 0
        %565 = vmatpush1.bf16.msra.mxu0 %v562
        %566 = vmatprep.subr.bf16.mxu0 0
        %567 = vmatpush1.bf16.msra.mxu0 0
        %568 = vmatprep.subr.bf16.mxu0 0
        %569 = vmatpush1.bf16.msra.mxu0 0
        %570 = vmatprep.subr.bf16.mxu0 0
        %571 = vmatpush1.bf16.msra.mxu0 0
        %572 = vmatprep.subr.bf16.mxu0 0
        %573 = vmatpush1.bf16.msra.mxu0 0
        %574 = vmatprep.subr.bf16.mxu0 0
        %575 = vmatpush1.bf16.msra.mxu0 0
        %576 = vmatprep.subr.bf16.mxu0 0
        %577 = vmatpush1.bf16.msra.mxu0 0
        %578 = vmatprep.subr.bf16.mxu0 0
        %579 = vmatpush1.bf16.msra.mxu0 0
        %580 = vmatprep.subr.bf16.mxu0 0
        %581 = vmatpush1.bf16.msra.mxu0 0
        %582 = vmatprep.subr.bf16.mxu0 0
        %583 = vmatpush1.bf16.msra.mxu0 0
        %584 = vmatprep.subr.bf16.mxu0 0
        %585 = vmatpush1.bf16.msra.mxu0 0
        %586 = vmatprep.subr.bf16.mxu0 0
        %587 = vmatpush1.bf16.msra.mxu0 0
        %588 = vmatprep.subr.bf16.mxu0 0
        %589 = vmatpush1.bf16.msra.mxu0 0
        %590 = vmatprep.subr.bf16.mxu0 0
        %591 = vmatpush1.bf16.msra.mxu0 0
        %592 = vmatprep.subr.bf16.mxu0 0
        %593 = vmatpush1.bf16.msra.mxu0 0
        %594 = vmatprep.subr.bf16.mxu0 0
        %595 = vmatpush1.bf16.msra.mxu0 0
        %596 = vmatprep.mubr.bf16.mxu0 0
        %597 = vmatmul.mubr.bf16.gmra.mrb[0].mxu0 %v465
        %v598 = vpop.f32.mrb[0].mxu0
        %v599 = vadd.f32 0.0, %v598
        %v600 = vpop.f32.mrb[0].mxu0
        %v601 = vpop.f32.mrb[0].mxu0
        %v602 = vadd.f32 0.0, %v601
        %v603 = vpop.f32.mrb[0].mxu0
        %604 = vmatprep.mubr.bf16.mxu0 0
        %605 = vmatmul.mubr.bf16.gmra.mrb[0].mxu0 %v468
        %v606 = vpop.f32.mrb[0].mxu0
        %v607 = vadd.f32 0.0, %v606
        %v608 = vpop.f32.mrb[0].mxu0
        %v609 = vpop.f32.mrb[0].mxu0
        %v610 = vadd.f32 0.0, %v609
        %v611 = vpop.f32.mrb[0].mxu0
        %612 = vmatprep.mubr.bf16.mxu0 0
        %613 = vmatmul.mubr.bf16.gmra.mrb[0].mxu0 %v471
        %v614 = vpop.f32.mrb[0].mxu0
        %v615 = vadd.f32 0.0, %v614
        %v616 = vpop.f32.mrb[0].mxu0
        %v617 = vpop.f32.mrb[0].mxu0
        %v618 = vadd.f32 0.0, %v617
        %v619 = vpop.f32.mrb[0].mxu0
        %620 = vmatprep.mubr.bf16.mxu0 0
        %621 = vmatmul.mubr.bf16.gmra.mrb[0].mxu0 %v474
        %v622 = vpop.f32.mrb[0].mxu0
        %v623 = vadd.f32 0.0, %v622
        %v624 = vpop.f32.mrb[0].mxu0
        %v625 = vpop.f32.mrb[0].mxu0
        %v626 = vadd.f32 0.0, %v625
        %v627 = vpop.f32.mrb[0].mxu0
        %628 = vmatprep.mubr.bf16.mxu0 0
        %629 = vmatmul.mubr.bf16.gmra.mrb[0].mxu0 %v477
        %v630 = vpop.f32.mrb[0].mxu0
        %v631 = vadd.f32 0.0, %v630
        %v632 = vpop.f32.mrb[0].mxu0
        %v633 = vpop.f32.mrb[0].mxu0
        %v634 = vadd.f32 0.0, %v633
        %v635 = vpop.f32.mrb[0].mxu0
        %636 = vmatprep.mubr.bf16.mxu0 0
        %637 = vmatmul.mubr.bf16.gmra.mrb[0].mxu0 %v480
        %v638 = vpop.f32.mrb[0].mxu0
        %v639 = vadd.f32 0.0, %v638
        %v640 = vpop.f32.mrb[0].mxu0
        %v641 = vpop.f32.mrb[0].mxu0
        %v642 = vadd.f32 0.0, %v641
        %v643 = vpop.f32.mrb[0].mxu0
        %644 = vmatprep.mubr.bf16.mxu0 0
        %645 = vmatmul.mubr.bf16.gmra.mrb[0].mxu0 %v483
        %v646 = vpop.f32.mrb[0].mxu0
        %v647 = vadd.f32 0.0, %v646
        %v648 = vpop.f32.mrb[0].mxu0
        %v649 = vpop.f32.mrb[0].mxu0
        %v650 = vadd.f32 0.0, %v649
        %v651 = vpop.f32.mrb[0].mxu0
        %652 = vmatprep.mubr.bf16.mxu0 0
        %653 = vmatmul.mubr.bf16.gmra.mrb[0].mxu0 %v486
        %v654 = vpop.f32.mrb[0].mxu0
        %v655 = vadd.f32 0.0, %v654
        %v656 = vpop.f32.mrb[0].mxu0
        %v657 = vpop.f32.mrb[0].mxu0
        %v658 = vadd.f32 0.0, %v657
        %v659 = vpop.f32.mrb[0].mxu0
        %660 = vmatprep.mubr.bf16.mxu0 0
        %661 = vmatmul.mubr.bf16.gmra.mrb[0].mxu0 %v489
        %v662 = vpop.f32.mrb[0].mxu0
        %v663 = vadd.f32 0.0, %v662
        %v664 = vpop.f32.mrb[0].mxu0
        %v665 = vpop.f32.mrb[0].mxu0
        %v666 = vadd.f32 0.0, %v665
        %v667 = vpop.f32.mrb[0].mxu0
        %668 = vmatprep.mubr.bf16.mxu0 0
        %669 = vmatmul.mubr.bf16.gmra.mrb[0].mxu0 %v492
        %v670 = vpop.f32.mrb[0].mxu0
        %v671 = vadd.f32 0.0, %v670
        %v672 = vpop.f32.mrb[0].mxu0
        %v673 = vpop.f32.mrb[0].mxu0
        %v674 = vadd.f32 0.0, %v673
        %v675 = vpop.f32.mrb[0].mxu0
        %676 = vmatprep.mubr.bf16.mxu0 0
        %677 = vmatmul.mubr.bf16.gmra.mrb[0].mxu0 %v495
        %v678 = vpop.f32.mrb[0].mxu0
        %v679 = vadd.f32 0.0, %v678
        %v680 = vpop.f32.mrb[0].mxu0
        %v681 = vpop.f32.mrb[0].mxu0
        %v682 = vadd.f32 0.0, %v681
        %v683 = vpop.f32.mrb[0].mxu0
        %684 = vmatprep.mubr.bf16.mxu0 0
        %685 = vmatmul.mubr.bf16.gmra.mrb[0].mxu0 %v498
        %v686 = vpop.f32.mrb[0].mxu0
        %v687 = vadd.f32 0.0, %v686
        %v688 = vpop.f32.mrb[0].mxu0
        %v689 = vpop.f32.mrb[0].mxu0
        %v690 = vadd.f32 0.0, %v689
        %v691 = vpop.f32.mrb[0].mxu0
        %692 = vmatprep.mubr.bf16.mxu0 0
        %693 = vmatmul.mubr.bf16.gmra.mrb[0].mxu0 %v501
        %v694 = vpop.f32.mrb[0].mxu0
        %v695 = vadd.f32 0.0, %v694
        %v696 = vpop.f32.mrb[0].mxu0
        %v697 = vpop.f32.mrb[0].mxu0
        %v698 = vadd.f32 0.0, %v697
        %v699 = vpop.f32.mrb[0].mxu0
        %700 = vmatprep.mubr.bf16.mxu0 0
        %701 = vmatmul.mubr.bf16.gmra.mrb[0].mxu0 %v504
        %v702 = vpop.f32.mrb[0].mxu0
        %v703 = vadd.f32 0.0, %v702
        %v704 = vpop.f32.mrb[0].mxu0
        %v705 = vpop.f32.mrb[0].mxu0
        %v706 = vadd.f32 0.0, %v705
        %v707 = vpop.f32.mrb[0].mxu0
        %708 = vmatprep.mubr.bf16.mxu0 0
        %709 = vmatmul.mubr.bf16.gmra.mrb[0].mxu0 %v507
        %v710 = vpop.f32.mrb[0].mxu0
        %v711 = vadd.f32 0.0, %v710
        %v712 = vpop.f32.mrb[0].mxu0
        %v713 = vpop.f32.mrb[0].mxu0
        %v714 = vadd.f32 0.0, %v713
        %v715 = vpop.f32.mrb[0].mxu0
        %716 = vmatprep.mubr.bf16.mxu0 0
        %717 = vmatmul.mubr.bf16.gmra.mrb[0].mxu0 %v510
        %v718 = vpop.f32.mrb[0].mxu0
        %v719 = vadd.f32 0.0, %v718
        %v720 = vpop.f32.mrb[0].mxu0
        %v721 = vpop.f32.mrb[0].mxu0
        %v722 = vadd.f32 0.0, %v721
        %v723 = vpop.f32.mrb[0].mxu0
        %724 = vmatprep.mubr.bf16.mxu0 0
        %725 = vmatmul.mubr.bf16.gmra.mrb[0].mxu0 %v513
        %v726 = vpop.f32.mrb[0].mxu0
        %v727 = vadd.f32 0.0, %v726
        %v728 = vpop.f32.mrb[0].mxu0
        %v729 = vpop.f32.mrb[0].mxu0
        %v730 = vadd.f32 0.0, %v729
        %v731 = vpop.f32.mrb[0].mxu0
        %732 = vmatprep.mubr.bf16.mxu0 0
        %733 = vmatmul.mubr.bf16.gmra.mrb[0].mxu0 %v516
        %v734 = vpop.f32.mrb[0].mxu0
        %v735 = vadd.f32 0.0, %v734
        %v736 = vpop.f32.mrb[0].mxu0
        %v737 = vpop.f32.mrb[0].mxu0
        %v738 = vadd.f32 0.0, %v737
        %v739 = vpop.f32.mrb[0].mxu0
        %740 = vmatprep.mubr.bf16.mxu0 0
        %741 = vmatmul.mubr.bf16.gmra.mrb[0].mxu0 %v519
        %v742 = vpop.f32.mrb[0].mxu0
        %v743 = vadd.f32 0.0, %v742
        %v744 = vpop.f32.mrb[0].mxu0
        %v745 = vpop.f32.mrb[0].mxu0
        %v746 = vadd.f32 0.0, %v745
        %v747 = vpop.f32.mrb[0].mxu0
        %748 = vmatprep.mubr.bf16.mxu0 0
        %749 = vmatmul.mubr.bf16.gmra.mrb[0].mxu0 %v522
        %v750 = vpop.f32.mrb[0].mxu0
        %v751 = vadd.f32 0.0, %v750
        %v752 = vpop.f32.mrb[0].mxu0
        %v753 = vpop.f32.mrb[0].mxu0
        %v754 = vadd.f32 0.0, %v753
        %v755 = vpop.f32.mrb[0].mxu0
        %756 = vmatprep.mubr.bf16.mxu0 0
        %757 = vmatmul.mubr.bf16.gmra.mrb[0].mxu0 %v525
        %v758 = vpop.f32.mrb[0].mxu0
        %v759 = vadd.f32 0.0, %v758
        %v760 = vpop.f32.mrb[0].mxu0
        %v761 = vpop.f32.mrb[0].mxu0
        %v762 = vadd.f32 0.0, %v761
        %v763 = vpop.f32.mrb[0].mxu0
        %764 = vmatprep.mubr.bf16.mxu0 0
        %765 = vmatmul.mubr.bf16.gmra.mrb[0].mxu0 %v528
        %v766 = vpop.f32.mrb[0].mxu0
        %v767 = vadd.f32 0.0, %v766
        %v768 = vpop.f32.mrb[0].mxu0
        %v769 = vpop.f32.mrb[0].mxu0
        %v770 = vadd.f32 0.0, %v769
        %v771 = vpop.f32.mrb[0].mxu0
        %772 = vmatprep.mubr.bf16.mxu0 0
        %773 = vmatmul.mubr.bf16.gmra.mrb[0].mxu0 %v531
        %v774 = vpop.f32.mrb[0].mxu0
        %v775 = vadd.f32 0.0, %v774
        %v776 = vpop.f32.mrb[0].mxu0
        %v777 = vpop.f32.mrb[0].mxu0
        %v778 = vadd.f32 0.0, %v777
        %v779 = vpop.f32.mrb[0].mxu0
        %780 = vmatprep.mubr.bf16.mxu0 0
        %781 = vmatmul.mubr.bf16.gmra.mrb[0].mxu0 %v534
        %v782 = vpop.f32.mrb[0].mxu0
        %v783 = vadd.f32 0.0, %v782
        %v784 = vpop.f32.mrb[0].mxu0
        %v785 = vpop.f32.mrb[0].mxu0
        %v786 = vadd.f32 0.0, %v785
        %v787 = vpop.f32.mrb[0].mxu0
        %788 = vmatprep.mubr.bf16.mxu0 0
        %789 = vmatmul.mubr.bf16.gmra.mrb[0].mxu0 %v537
        %v790 = vpop.f32.mrb[0].mxu0
        %v791 = vadd.f32 0.0, %v790
        %v792 = vpop.f32.mrb[0].mxu0
        %v793 = vpop.f32.mrb[0].mxu0
        %v794 = vadd.f32 0.0, %v793
        %v795 = vpop.f32.mrb[0].mxu0
        %796 = vmatprep.mubr.bf16.mxu0 0
        %797 = vmatmul.mubr.bf16.gmra.mrb[0].mxu0 %v540
        %v798 = vpop.f32.mrb[0].mxu0
        %v799 = vadd.f32 0.0, %v798
        %v800 = vpop.f32.mrb[0].mxu0
        %v801 = vpop.f32.mrb[0].mxu0
        %v802 = vadd.f32 0.0, %v801
        %v803 = vpop.f32.mrb[0].mxu0
        %804 = vmatprep.mubr.bf16.mxu0 0
        %805 = vmatmul.mubr.bf16.gmra.mrb[0].mxu0 %v543
        %v806 = vpop.f32.mrb[0].mxu0
        %v807 = vadd.f32 0.0, %v806
        %v808 = vpop.f32.mrb[0].mxu0
        %v809 = vpop.f32.mrb[0].mxu0
        %v810 = vadd.f32 0.0, %v809
        %v811 = vpop.f32.mrb[0].mxu0
        %812 = vmatprep.mubr.bf16.mxu0 0
        %813 = vmatmul.mubr.bf16.gmra.mrb[0].mxu0 %v546
        %v814 = vpop.f32.mrb[0].mxu0
        %v815 = vadd.f32 0.0, %v814
        %v816 = vpop.f32.mrb[0].mxu0
        %v817 = vpop.f32.mrb[0].mxu0
        %v818 = vadd.f32 0.0, %v817
        %v819 = vpop.f32.mrb[0].mxu0
        %820 = vmatprep.mubr.bf16.mxu0 0
        %821 = vmatmul.mubr.bf16.gmra.mrb[0].mxu0 %v549
        %v822 = vpop.f32.mrb[0].mxu0
        %v823 = vadd.f32 0.0, %v822
        %v824 = vpop.f32.mrb[0].mxu0
        %v825 = vpop.f32.mrb[0].mxu0
        %v826 = vadd.f32 0.0, %v825
        %v827 = vpop.f32.mrb[0].mxu0
        %828 = vmatprep.mubr.bf16.mxu0 0
        %829 = vmatmul.mubr.bf16.gmra.mrb[0].mxu0 %v552
        %v830 = vpop.f32.mrb[0].mxu0
        %v831 = vadd.f32 0.0, %v830
        %v832 = vpop.f32.mrb[0].mxu0
        %v833 = vpop.f32.mrb[0].mxu0
        %v834 = vadd.f32 0.0, %v833
        %v835 = vpop.f32.mrb[0].mxu0
        %836 = vmatprep.mubr.bf16.mxu0 0
        %837 = vmatmul.mubr.bf16.gmra.mrb[0].mxu0 %v555
        %v838 = vpop.f32.mrb[0].mxu0
        %v839 = vadd.f32 0.0, %v838
        %v840 = vpop.f32.mrb[0].mxu0
        %v841 = vpop.f32.mrb[0].mxu0
        %v842 = vadd.f32 0.0, %v841
        %v843 = vpop.f32.mrb[0].mxu0
        %844 = vmatprep.mubr.bf16.mxu0 0
        %845 = vmatmul.mubr.bf16.gmra.mrb[0].mxu0 %v558
        %v846 = vpop.f32.mrb[0].mxu0
        %v847 = vadd.f32 0.0, %v846
        %v848 = vpop.f32.mrb[0].mxu0
        %v849 = vpop.f32.mrb[0].mxu0
        %v850 = vadd.f32 0.0, %v849
        %v851 = vpop.f32.mrb[0].mxu0
        %852 = vdwg.mxu0
        %v853 = vld [vmem:[#allocation5] sm:$0x1]
        %v855 = vlaneseq
        %v856 = vshrl.u32 %v855, 7
        %v857 = vsub.s32 0, %v856
        %v858 = vrot.slane %v853, %v857
        %v860 = vmul.f32 %v599, %v858
        %v861 = vmul.f32 %v602, %v858
        %v862 = vmul.f32 %v607, %v858
        %v863 = vmul.f32 %v610, %v858
        %v864 = vmul.f32 %v615, %v858
        %v865 = vmul.f32 %v618, %v858
        %v866 = vmul.f32 %v623, %v858
        %v867 = vmul.f32 %v626, %v858
        %v868 = vmul.f32 %v631, %v858
        %v869 = vmul.f32 %v634, %v858
        %v870 = vmul.f32 %v639, %v858
        %v871 = vmul.f32 %v642, %v858
        %v872 = vmul.f32 %v647, %v858
        %v873 = vmul.f32 %v650, %v858
        %v874 = vmul.f32 %v655, %v858
        %v875 = vmul.f32 %v658, %v858
        %v876 = vmul.f32 %v663, %v858
        %v877 = vmul.f32 %v666, %v858
        %v878 = vmul.f32 %v671, %v858
        %v879 = vmul.f32 %v674, %v858
        %v880 = vmul.f32 %v679, %v858
        %v881 = vmul.f32 %v682, %v858
        %v882 = vmul.f32 %v687, %v858
        %v883 = vmul.f32 %v690, %v858
        %v884 = vmul.f32 %v695, %v858
        %v885 = vmul.f32 %v698, %v858
        %v886 = vmul.f32 %v703, %v858
        %v887 = vmul.f32 %v706, %v858
        %v888 = vmul.f32 %v711, %v858
        %v889 = vmul.f32 %v714, %v858
        %v890 = vmul.f32 %v719, %v858
        %v891 = vmul.f32 %v722, %v858
        %v892 = vmul.f32 %v727, %v858
        %v893 = vmul.f32 %v730, %v858
        %v894 = vmul.f32 %v735, %v858
        %v895 = vmul.f32 %v738, %v858
        %v896 = vmul.f32 %v743, %v858
        %v897 = vmul.f32 %v746, %v858
        %v898 = vmul.f32 %v751, %v858
        %v899 = vmul.f32 %v754, %v858
        %v900 = vmul.f32 %v759, %v858
        %v901 = vmul.f32 %v762, %v858
        %v902 = vmul.f32 %v767, %v858
        %v903 = vmul.f32 %v770, %v858
        %v904 = vmul.f32 %v775, %v858
        %v905 = vmul.f32 %v778, %v858
        %v906 = vmul.f32 %v783, %v858
        %v907 = vmul.f32 %v786, %v858
        %v908 = vmul.f32 %v791, %v858
        %v909 = vmul.f32 %v794, %v858
        %v910 = vmul.f32 %v799, %v858
        %v911 = vmul.f32 %v802, %v858
        %v912 = vmul.f32 %v807, %v858
        %v913 = vmul.f32 %v810, %v858
        %v914 = vmul.f32 %v815, %v858
        %v915 = vmul.f32 %v818, %v858
        %v916 = vmul.f32 %v823, %v858
        %v917 = vmul.f32 %v826, %v858
        %v918 = vmul.f32 %v831, %v858
        %v919 = vmul.f32 %v834, %v858
        %v920 = vmul.f32 %v839, %v858
        %v921 = vmul.f32 %v842, %v858
        %v922 = vmul.f32 %v847, %v858
        %v923 = vmul.f32 %v850, %v858
        %v924 = vld [vmem:[#allocation7] sm:$0x1]
        %v926 = vlaneseq
        %v927 = vshrl.u32 %v926, 7
        %v928 = vsub.s32 0, %v927
        %v929 = vrot.slane %v924, %v928
        %v931 = vadd.f32 %v860, %v929
        %v932 = vadd.f32 %v861, %v929
        %v933 = vadd.f32 %v862, %v929
        %v934 = vadd.f32 %v863, %v929
        %v935 = vadd.f32 %v864, %v929
        %v936 = vadd.f32 %v865, %v929
        %v937 = vadd.f32 %v866, %v929
        %v938 = vadd.f32 %v867, %v929
        %v939 = vadd.f32 %v868, %v929
        %v940 = vadd.f32 %v869, %v929
        %v941 = vadd.f32 %v870, %v929
        %v942 = vadd.f32 %v871, %v929
        %v943 = vadd.f32 %v872, %v929
        %v944 = vadd.f32 %v873, %v929
        %v945 = vadd.f32 %v874, %v929
        %v946 = vadd.f32 %v875, %v929
        %v947 = vadd.f32 %v876, %v929
        %v948 = vadd.f32 %v877, %v929
        %v949 = vadd.f32 %v878, %v929
        %v950 = vadd.f32 %v879, %v929
        %v951 = vadd.f32 %v880, %v929
        %v952 = vadd.f32 %v881, %v929
        %v953 = vadd.f32 %v882, %v929
        %v954 = vadd.f32 %v883, %v929
        %v955 = vadd.f32 %v884, %v929
        %v956 = vadd.f32 %v885, %v929
        %v957 = vadd.f32 %v886, %v929
        %v958 = vadd.f32 %v887, %v929
        %v959 = vadd.f32 %v888, %v929
        %v960 = vadd.f32 %v889, %v929
        %v961 = vadd.f32 %v890, %v929
        %v962 = vadd.f32 %v891, %v929
        %v963 = vadd.f32 %v892, %v929
        %v964 = vadd.f32 %v893, %v929
        %v965 = vadd.f32 %v894, %v929
        %v966 = vadd.f32 %v895, %v929
        %v967 = vadd.f32 %v896, %v929
        %v968 = vadd.f32 %v897, %v929
        %v969 = vadd.f32 %v898, %v929
        %v970 = vadd.f32 %v899, %v929
        %v971 = vadd.f32 %v900, %v929
        %v972 = vadd.f32 %v901, %v929
        %v973 = vadd.f32 %v902, %v929
        %v974 = vadd.f32 %v903, %v929
        %v975 = vadd.f32 %v904, %v929
        %v976 = vadd.f32 %v905, %v929
        %v977 = vadd.f32 %v906, %v929
        %v978 = vadd.f32 %v907, %v929
        %v979 = vadd.f32 %v908, %v929
        %v980 = vadd.f32 %v909, %v929
        %v981 = vadd.f32 %v910, %v929
        %v982 = vadd.f32 %v911, %v929
        %v983 = vadd.f32 %v912, %v929
        %v984 = vadd.f32 %v913, %v929
        %v985 = vadd.f32 %v914, %v929
        %v986 = vadd.f32 %v915, %v929
        %v987 = vadd.f32 %v916, %v929
        %v988 = vadd.f32 %v917, %v929
        %v989 = vadd.f32 %v918, %v929
        %v990 = vadd.f32 %v919, %v929
        %v991 = vadd.f32 %v920, %v929
        %v992 = vadd.f32 %v921, %v929
        %v993 = vadd.f32 %v922, %v929
        %v994 = vadd.f32 %v923, %v929
        %v995 = vmax.f32 %v931, 0.0
        %v996 = vmax.f32 %v932, 0.0
        %v997 = vmax.f32 %v933, 0.0
        %v998 = vmax.f32 %v934, 0.0
        %v999 = vmax.f32 %v935, 0.0
        %v1000 = vmax.f32 %v936, 0.0
        %v1001 = vmax.f32 %v937, 0.0
        %v1002 = vmax.f32 %v938, 0.0
        %v1003 = vmax.f32 %v939, 0.0
        %v1004 = vmax.f32 %v940, 0.0
        %v1005 = vmax.f32 %v941, 0.0
        %v1006 = vmax.f32 %v942, 0.0
        %v1007 = vmax.f32 %v943, 0.0
        %v1008 = vmax.f32 %v944, 0.0
        %v1009 = vmax.f32 %v945, 0.0
        %v1010 = vmax.f32 %v946, 0.0
        %v1011 = vmax.f32 %v947, 0.0
        %v1012 = vmax.f32 %v948, 0.0
        %v1013 = vmax.f32 %v949, 0.0
        %v1014 = vmax.f32 %v950, 0.0
        %v1015 = vmax.f32 %v951, 0.0
        %v1016 = vmax.f32 %v952, 0.0
        %v1017 = vmax.f32 %v953, 0.0
        %v1018 = vmax.f32 %v954, 0.0
        %v1019 = vmax.f32 %v955, 0.0
        %v1020 = vmax.f32 %v956, 0.0
        %v1021 = vmax.f32 %v957, 0.0
        %v1022 = vmax.f32 %v958, 0.0
        %v1023 = vmax.f32 %v959, 0.0
        %v1024 = vmax.f32 %v960, 0.0
        %v1025 = vmax.f32 %v961, 0.0
        %v1026 = vmax.f32 %v962, 0.0
        %v1027 = vmax.f32 %v963, 0.0
        %v1028 = vmax.f32 %v964, 0.0
        %v1029 = vmax.f32 %v965, 0.0
        %v1030 = vmax.f32 %v966, 0.0
        %v1031 = vmax.f32 %v967, 0.0
        %v1032 = vmax.f32 %v968, 0.0
        %v1033 = vmax.f32 %v969, 0.0
        %v1034 = vmax.f32 %v970, 0.0
        %v1035 = vmax.f32 %v971, 0.0
        %v1036 = vmax.f32 %v972, 0.0
        %v1037 = vmax.f32 %v973, 0.0
        %v1038 = vmax.f32 %v974, 0.0
        %v1039 = vmax.f32 %v975, 0.0
        %v1040 = vmax.f32 %v976, 0.0
        %v1041 = vmax.f32 %v977, 0.0
        %v1042 = vmax.f32 %v978, 0.0
        %v1043 = vmax.f32 %v979, 0.0
        %v1044 = vmax.f32 %v980, 0.0
        %v1045 = vmax.f32 %v981, 0.0
        %v1046 = vmax.f32 %v982, 0.0
        %v1047 = vmax.f32 %v983, 0.0
        %v1048 = vmax.f32 %v984, 0.0
        %v1049 = vmax.f32 %v985, 0.0
        %v1050 = vmax.f32 %v986, 0.0
        %v1051 = vmax.f32 %v987, 0.0
        %v1052 = vmax.f32 %v988, 0.0
        %v1053 = vmax.f32 %v989, 0.0
        %v1054 = vmax.f32 %v990, 0.0
        %v1055 = vmax.f32 %v991, 0.0
        %v1056 = vmax.f32 %v992, 0.0
        %v1057 = vmax.f32 %v993, 0.0
        %v1058 = vmax.f32 %v994, 0.0
        %1059 = vst [vmem:[%s229] sm:$0xff] %v995
        %1060 = vst [vmem:[%s229 + $0x8] sm:$0xff] %v996
        %1061 = vst [vmem:[%s229 + $0x10] sm:$0xff] %v997
        %1062 = vst [vmem:[%s229 + $0x18] sm:$0xff] %v998
        %1063 = vst [vmem:[%s229 + $0x20] sm:$0xff] %v999
        %1064 = vst [vmem:[%s229 + $0x28] sm:$0xff] %v1000
        %1065 = vst [vmem:[%s229 + $0x30] sm:$0xff] %v1001
        %1066 = vst [vmem:[%s229 + $0x38] sm:$0xff] %v1002
        %1067 = vst [vmem:[%s229 + $0x40] sm:$0xff] %v1003
        %1068 = vst [vmem:[%s229 + $0x48] sm:$0xff] %v1004
        %1069 = vst [vmem:[%s229 + $0x50] sm:$0xff] %v1005
        %1070 = vst [vmem:[%s229 + $0x58] sm:$0xff] %v1006
        %1071 = vst [vmem:[%s229 + $0x60] sm:$0xff] %v1007
        %1072 = vst [vmem:[%s229 + $0x68] sm:$0xff] %v1008
        %1073 = vst [vmem:[%s229 + $0x70] sm:$0xff] %v1009
        %1074 = vst [vmem:[%s229 + $0x78] sm:$0xff] %v1010
        %1075 = vst [vmem:[%s229 + $0x80] sm:$0xff] %v1011
        %1076 = vst [vmem:[%s229 + $0x88] sm:$0xff] %v1012
        %1077 = vst [vmem:[%s229 + $0x90] sm:$0xff] %v1013
        %1078 = vst [vmem:[%s229 + $0x98] sm:$0xff] %v1014
        %1079 = vst [vmem:[%s229 + $0xa0] sm:$0xff] %v1015
        %1080 = vst [vmem:[%s229 + $0xa8] sm:$0xff] %v1016
        %1081 = vst [vmem:[%s229 + $0xb0] sm:$0xff] %v1017
        %1082 = vst [vmem:[%s229 + $0xb8] sm:$0xff] %v1018
        %1083 = vst [vmem:[%s229 + $0xc0] sm:$0xff] %v1019
        %1084 = vst [vmem:[%s229 + $0xc8] sm:$0xff] %v1020
        %1085 = vst [vmem:[%s229 + $0xd0] sm:$0xff] %v1021
        %1086 = vst [vmem:[%s229 + $0xd8] sm:$0xff] %v1022
        %1087 = vst [vmem:[%s229 + $0xe0] sm:$0xff] %v1023
        %1088 = vst [vmem:[%s229 + $0xe8] sm:$0xff] %v1024
        %1089 = vst [vmem:[%s229 + $0xf0] sm:$0xff] %v1025
        %1090 = vst [vmem:[%s229 + $0xf8] sm:$0xff] %v1026
        %1091 = vst [vmem:[%s229 + $0x100] sm:$0xff] %v1027
        %1092 = vst [vmem:[%s229 + $0x108] sm:$0xff] %v1028
        %1093 = vst [vmem:[%s229 + $0x110] sm:$0xff] %v1029
        %1094 = vst [vmem:[%s229 + $0x118] sm:$0xff] %v1030
        %1095 = vst [vmem:[%s229 + $0x120] sm:$0xff] %v1031
        %1096 = vst [vmem:[%s229 + $0x128] sm:$0xff] %v1032
        %1097 = vst [vmem:[%s229 + $0x130] sm:$0xff] %v1033
        %1098 = vst [vmem:[%s229 + $0x138] sm:$0xff] %v1034
        %1099 = vst [vmem:[%s229 + $0x140] sm:$0xff] %v1035
        %1100 = vst [vmem:[%s229 + $0x148] sm:$0xff] %v1036
        %1101 = vst [vmem:[%s229 + $0x150] sm:$0xff] %v1037
        %1102 = vst [vmem:[%s229 + $0x158] sm:$0xff] %v1038
        %1103 = vst [vmem:[%s229 + $0x160] sm:$0xff] %v1039
        %1104 = vst [vmem:[%s229 + $0x168] sm:$0xff] %v1040
        %1105 = vst [vmem:[%s229 + $0x170] sm:$0xff] %v1041
        %1106 = vst [vmem:[%s229 + $0x178] sm:$0xff] %v1042
        %1107 = vst [vmem:[%s229 + $0x180] sm:$0xff] %v1043
        %1108 = vst [vmem:[%s229 + $0x188] sm:$0xff] %v1044
        %1109 = vst [vmem:[%s229 + $0x190] sm:$0xff] %v1045
        %1110 = vst [vmem:[%s229 + $0x198] sm:$0xff] %v1046
        %1111 = vst [vmem:[%s229 + $0x1a0] sm:$0xff] %v1047
        %1112 = vst [vmem:[%s229 + $0x1a8] sm:$0xff] %v1048
        %1113 = vst [vmem:[%s229 + $0x1b0] sm:$0xff] %v1049
        %1114 = vst [vmem:[%s229 + $0x1b8] sm:$0xff] %v1050
        %1115 = vst [vmem:[%s229 + $0x1c0] sm:$0xff] %v1051
        %1116 = vst [vmem:[%s229 + $0x1c8] sm:$0xff] %v1052
        %1117 = vst [vmem:[%s229 + $0x1d0] sm:$0xff] %v1053
        %1118 = vst [vmem:[%s229 + $0x1d8] sm:$0xff] %v1054
        %1119 = vst [vmem:[%s229 + $0x1e0] sm:$0xff] %v1055
        %1120 = vst [vmem:[%s229 + $0x1e8] sm:$0xff] %v1056
        %1121 = vst [vmem:[%s229 + $0x1f0] sm:$0xff] %v1057
        %1122 = vst [vmem:[%s229 + $0x1f8] sm:$0xff] %v1058
        %s1123 = sand.u32 %s117, 1
        %s1124 = scalar_lea.sflag [#allocation4], %s1123
        %s1125 = sand.u32 %s117, 1
        %s1126 = smul.addr %s1125, 512
        %s1127 = scalar_lea.vmem [#allocation8], %s1126
        // Predicated region
        $region49: #{tpu_custom_call.1} parent=35 // pred_check
          %p1128 = pneg %p127
        $region50: #{tpu_custom_call.1} parent=35 // pred_check_branch
          %1130 = sbr.rel (%p1128) target = $region52
        $region51: #{tpu_custom_call.1} parent=35 // pred_region
          %s1131 = smul.u32 64, %s20
          %s1133 = ssub.s32 8192, 8192
          %1134 = vsyncadd %s1124, %s1133
          %s1135 = smul.addr %s1131, 128
          %s1136 = scalar_lea.hbm %s4, %s1135
          %s1137 = sshll.u32 %s1127, 4
          %s1138 = int_to_ptr.vmem [resolvable:$true] %s1137
          %1143 = dma.vmem_to_hbm [thread:$0]  %s1138, 8192, %s1136, %s1124, 128, 128, 8
        $region52: #{tpu_custom_call.1} parent=35 // pred_fallthru
          _
      $region36: #{tpu_custom_call.1} parent=5 // pred_fallthru
        _
      %p1144 = scmp.le.s32.totalorder 2, %s15
      // Predicated region
      $region53: #{tpu_custom_call.1} parent=5 // pred_check
        %p1145 = pneg %p1144
      $region54: #{tpu_custom_call.1} parent=5 // pred_check_branch
        %1147 = sbr.rel (%p1145) target = $region56
      $region55: #{tpu_custom_call.1} parent=5 // pred_region
        %s1148 = ssub.s32 %s15, 2
        // Predicated region
        $region57: #{tpu_custom_call.1} parent=55 // pred_check
          %p1149 = pneg %p133
        $region58: #{tpu_custom_call.1} parent=55 // pred_check_branch
          %1151 = sbr.rel (%p1149) target = $region60
        $region59: #{tpu_custom_call.1} parent=55 // pred_region
          %s1152 = sand.u32 %s118, 1
          %s1153 = scalar_lea.sflag [#allocation4], %s1152
          %s1154 = sand.u32 %s118, 1
          %s1155 = smul.addr %s1154, 512
          %s1156 = scalar_lea.vmem [#allocation8], %s1155
          %1157 = dma.done %s1153, 8192
        $region60: #{tpu_custom_call.1} parent=55 // pred_fallthru
          _
      $region56: #{tpu_custom_call.1} parent=5 // pred_fallthru
        _
    $region6: #{tpu_custom_call.1} parent=1 // loop_footer
      %s19 = sadd.s32 1, %s15
    $region7: #{tpu_custom_call.1} parent=1 // loop_footer_branch
      %14 = sbr.rel target = $region3
    $region8: #{tpu_custom_call.1} parent=1 // loop_exit
      _
    %1158 = vsyncpa [#allocation3], 1
    %s1159 = scalar_lea.sflag [#allocation3], 1
    %1160 = vsyncpa %s1159, 1
    %1161 = vsyncpa [#allocation6], 1
    %1162 = vsyncpa [#allocation4], 1
    %s1163 = scalar_lea.sflag [#allocation4], 1
    %1164 = vsyncpa %s1163, 1

</llo_original>
